<compile_context>
chip_gen: v5e
topology: v5e:2x2
jax: 0.10.0
libtpu: 0.0.40
codegen_flags: <defaults>
</compile_context>

<pallas_src>
import functools
import math

import jax
import jax.numpy as jnp
from jax import lax
from jax.experimental import pallas as pl
from jax.experimental.pallas import tpu as pltpu


def mha_kernel(x_ref, gamma_ref, beta_ref, wqkv_ref, wo_ref, mask_ref, o_ref, *,
               n_heads, d_head, eps):
    """One grid step: LayerNorm -> fused QKV -> causal attention -> out proj.

    x_ref:    (b_blk, S, d_resid)     residual-stream block (batch folded below)
    wqkv_ref: (d_resid, 3*H*d_head)   fused [Wq*1/sqrt(dh) | Wk | Wv] columns
    wo_ref:   (H, d_head, d_model)    per-head output projection slabs
    mask_ref: (b_blk*S, b_blk*S)      0 / -inf causal + same-sequence bias
    """
    b_blk, seq, d_resid = x_ref.shape
    d_model = o_ref.shape[-1]
    n = b_blk * seq
    hd = n_heads * d_head

    # --- LayerNorm over the residual feature axis, on the folded (n, d) slab ---
    x = x_ref[...].reshape(n, d_resid)
    mean = jnp.mean(x, axis=-1, keepdims=True)
    var = jnp.mean((x - mean) ** 2, axis=-1, keepdims=True)
    xn = (x - mean) * lax.rsqrt(var + eps)
    xn = xn * gamma_ref[0] + beta_ref[0]

    # --- Fused Q/K/V projection: single MXU pass (n, d_resid) x (d_resid, 3*H*dh) ---
    # TODO(synk): optionally cast MXU operands to bf16 on v6e/v7x (keep LN/softmax f32).
    qkv = jnp.dot(xn, wqkv_ref[...], preferred_element_type=jnp.float32)

    mask_bias = mask_ref[...]  # additive 0 / -inf (causal within each sequence)

    # --- Per-head attention; output projection accumulates over heads (no concat /
    #     transpose).  H is small, so a static unroll keeps LLO visibility. ---
    # TODO(synk): for large S switch to a KV-tiled online softmax (flash-style)
    #             to keep the scores working set under v7x's 64 MiB VMEM.
    out = jnp.zeros((n, d_model), jnp.float32)
    for h in range(n_heads):
        q_h = qkv[:, h * d_head:(h + 1) * d_head]            # pre-scaled by 1/sqrt(dh)
        k_h = qkv[:, hd + h * d_head:hd + (h + 1) * d_head]
        v_h = qkv[:, 2 * hd + h * d_head:2 * hd + (h + 1) * d_head]

        # scores = q k^T, contracting d_head directly (no explicit transpose)
        s = lax.dot_general(q_h, k_h, (((1,), (1,)), ((), ())),
                            preferred_element_type=jnp.float32)   # (n, n)
        s = s + mask_bias

        m = jnp.max(s, axis=-1, keepdims=True)
        e = jnp.exp(s - m)
        denom = jnp.sum(e, axis=-1, keepdims=True)
        p = e * pl.reciprocal(denom, approx=True)                 # EUP reciprocal

        av = jnp.dot(p, v_h, preferred_element_type=jnp.float32)  # (n, d_head)
        out = out + jnp.dot(av, wo_ref[h], preferred_element_type=jnp.float32)

    o_ref[...] = out.reshape(b_blk, seq, d_model).astype(o_ref.dtype)


def multi_head_attention(x, gamma, beta, wq, wk, wv, wo, *, num_batch_blocks=None):
    """x: (B, S, d_model) f32. Weights have the PyTorch module's shapes."""
    B, S, _ = x.shape
    H, d_resid, d_head = wq.shape
    d_model = wo.shape[1]

    if num_batch_blocks is None:
        # v7x has 2 TensorCores -> keep a 2-wide "parallel" grid axis when possible.
        # On single-TC chips (v5e / v6e) with small B, pass num_batch_blocks=1 to
        # fold the whole batch into one grid step (removes per-step overhead).
        num_batch_blocks = 2 if (B > 1 and B % 2 == 0) else 1
    assert B % num_batch_blocks == 0, "B must be divisible by num_batch_blocks"
    b_blk = B // num_batch_blocks
    n = b_blk * S

    # ---- one-time weight prep (would normally happen at parameter-load time) ----
    scale = jnp.float32(1.0 / math.sqrt(d_head))

    def head_major_cols(w):  # (H, d_resid, d_head) -> (d_resid, H*d_head)
        return jnp.transpose(w, (1, 0, 2)).reshape(d_resid, H * d_head)

    wqkv = jnp.concatenate(
        [head_major_cols(wq) * scale, head_major_cols(wk), head_major_cols(wv)],
        axis=1)                                   # (d_resid, 3*H*d_head)
    wo_r = wo.reshape(H, d_head, d_model)         # per-head output projection slabs

    # Causal + same-sequence (block-diagonal) additive mask for the folded
    # (b_blk*S, b_blk*S) scores — the analogue of the module's registered
    # minus_infinity_triangle buffer.
    r = jnp.arange(n)
    visible = (r[None, :] <= r[:, None]) & ((r[:, None] // S) == (r[None, :] // S))
    mask_bias = jnp.where(visible, 0.0, -jnp.inf).astype(jnp.float32)

    # Slice the first d_resid columns via the BlockSpec when the (8,128) tiling
    # rule allows it; otherwise fall back to an XLA slice.
    if d_resid == x.shape[2] or d_resid % 128 == 0:
        x_in = x
    else:
        x_in = x[:, :, :d_resid]  # TODO(synk): lane-masked BlockSpec for ragged d_resid

    kernel = functools.partial(mha_kernel, n_heads=H, d_head=d_head, eps=1e-5)
    return pl.pallas_call(
        kernel,
        out_shape=jax.ShapeDtypeStruct((B, S, d_model), jnp.float32),
        grid_spec=pltpu.PrefetchScalarGridSpec(
            num_scalar_prefetch=0,
            grid=(num_batch_blocks,),
            in_specs=[
                pl.BlockSpec((b_blk, S, d_resid), lambda i: (i, 0, 0)),
                pl.BlockSpec((1, d_resid), lambda i: (0, 0)),
                pl.BlockSpec((1, d_resid), lambda i: (0, 0)),
                pl.BlockSpec((d_resid, 3 * H * d_head), lambda i: (0, 0)),
                pl.BlockSpec((H, d_head, d_model), lambda i: (0, 0, 0)),
                pl.BlockSpec((n, n), lambda i: (0, 0)),
            ],
            out_specs=pl.BlockSpec((b_blk, S, d_model), lambda i: (i, 0, 0)),
        ),
        compiler_params=pltpu.CompilerParams(dimension_semantics=("parallel",)),
    )(x_in, gamma, beta, wqkv, wo_r, mask_bias)


def reference(x, gamma, beta, wq, wk, wv, wo):
    """Pure-JAX reference mirroring the PyTorch forward."""
    H, d_resid, d_head = wq.shape
    xr = x[:, :, :d_resid]
    mean = jnp.mean(xr, axis=-1, keepdims=True)
    var = jnp.mean((xr - mean) ** 2, axis=-1, keepdims=True)
    xn = (xr - mean) / jnp.sqrt(var + 1e-5) * gamma[0] + beta[0]
    q = jnp.einsum('bpd,hdk->bhpk', xn, wq)
    k = jnp.einsum('bpd,hdk->bhpk', xn, wk)
    v = jnp.einsum('bpd,hdk->bhpk', xn, wv)
    scores = jnp.einsum('bhqk,bhsk->bhqs', q, k) / math.sqrt(d_head)
    S = scores.shape[-1]
    mask = jnp.triu(jnp.full((S, S), -jnp.inf), k=1)
    scores = scores + mask
    probs = jax.nn.softmax(scores, axis=-1)
    attn = jnp.einsum('bhqs,bhsk->bhqk', probs, v)
    attn_concat = jnp.transpose(attn, (0, 2, 1, 3)).reshape(x.shape[0], S, -1)
    return jnp.einsum('bpd,dm->bpm', attn_concat, wo)


if __name__ == "__main__":
    # Small config consistent with the module: d_model = d_resid = 32, d_head = 8
    # => n_heads = 4, batch = 2, seq (n_ctx) = 8.
    B, S = 2, 8
    d_model, d_resid, d_head = 32, 32, 8
    n_heads = d_resid // d_head

    key = jax.random.PRNGKey(0)
    kx, kq, kk, kv, ko = jax.random.split(key, 5)

    x = jax.random.normal(kx, (B, S, d_model), dtype=jnp.float32)

    # Parameter init matching the PyTorch shapes / init scales
    # (kaiming_normal_ on a 3-D (H, d_resid, d_head) tensor -> fan_in = d_resid*d_head).
    kaiming_std = math.sqrt(2.0 / (d_resid * d_head))
    xavier_std = math.sqrt(2.0 / (d_resid + d_model))
    wq = jax.random.normal(kq, (n_heads, d_resid, d_head), jnp.float32) * kaiming_std
    wk = jax.random.normal(kk, (n_heads, d_resid, d_head), jnp.float32) * kaiming_std
    wv = jax.random.normal(kv, (n_heads, d_resid, d_head), jnp.float32) * kaiming_std
    wo = jax.random.normal(ko, (d_resid, d_model), jnp.float32) * xavier_std
    gamma = jnp.ones((1, d_resid), jnp.float32)   # LayerNorm weight
    beta = jnp.zeros((1, d_resid), jnp.float32)   # LayerNorm bias

    # Default: 2-wide parallel grid (uses both TensorCores on v7x).
    out_parallel = jax.block_until_ready(
        multi_head_attention(x, gamma, beta, wq, wk, wv, wo))
    # Folded batch: single grid step (the right choice on single-TC v5e / v6e).
    out_folded = jax.block_until_ready(
        multi_head_attention(x, gamma, beta, wq, wk, wv, wo, num_batch_blocks=1))

    ref = reference(x, gamma, beta, wq, wk, wv, wo)
    # Tolerance is relaxed vs f32-exact because the softmax denominator uses the
    # EUP approximate reciprocal (pl.reciprocal(approx=True)).
    for out in (out_parallel, out_folded):
        assert out.shape == (B, S, d_model)
        assert jnp.allclose(out, ref, atol=1e-2, rtol=1e-2), "mismatch vs reference"

    print("KERNEL_OK")
</pallas_src>

<mosaic_0001>
module attributes {stable_mosaic.version = 11 : i64} {
  func.func @mha_kernel(%arg0: i32, %arg1: memref<1x8x32xf32, #tpu.memory_space<vmem>>, %arg2: memref<1x32xf32, #tpu.memory_space<vmem>>, %arg3: memref<1x32xf32, #tpu.memory_space<vmem>>, %arg4: memref<32x96xf32, #tpu.memory_space<vmem>>, %arg5: memref<4x8x32xf32, #tpu.memory_space<vmem>>, %arg6: memref<8x8xf32, #tpu.memory_space<vmem>>, %arg7: memref<1x8x32xf32, #tpu.memory_space<vmem>>) attributes {dimension_semantics = [#tpu.dimension_semantics<parallel>], iteration_bounds = array<i64: 2>, scalar_prefetch = 0 : i64, scratch_operands = 0 : i64, tpu.core_type = #tpu.core_type<tc>, window_params = [{transform_indices = @transform_0, window_bounds = array<i64: 1, 8, 32>}, {pipeline_mode = #tpu.pipeline_mode<synchronous>, transform_indices = @transform_1, window_bounds = array<i64: 1, 32>}, {pipeline_mode = #tpu.pipeline_mode<synchronous>, transform_indices = @transform_2, window_bounds = array<i64: 1, 32>}, {pipeline_mode = #tpu.pipeline_mode<synchronous>, transform_indices = @transform_3, window_bounds = array<i64: 32, 96>}, {pipeline_mode = #tpu.pipeline_mode<synchronous>, transform_indices = @transform_4, window_bounds = array<i64: 4, 8, 32>}, {pipeline_mode = #tpu.pipeline_mode<synchronous>, transform_indices = @transform_5, window_bounds = array<i64: 8, 8>}, {transform_indices = @transform_6, window_bounds = array<i64: 1, 8, 32>}]} {
    %c0 = arith.constant 0 : index
    %c0_0 = arith.constant 0 : index
    %c0_1 = arith.constant 0 : index
    %0 = vector.load %arg1[%c0, %c0_0, %c0_1] : memref<1x8x32xf32, #tpu.memory_space<vmem>>, vector<1x8x32xf32>
    %1 = vector.shape_cast %0 : vector<1x8x32xf32> to vector<8x32xf32>
    %cst = arith.constant dense<0.000000e+00> : vector<8xf32>
    %2 = vector.multi_reduction <add>, %1, %cst [1] : vector<8x32xf32> to vector<8xf32>
    %3 = vector.shape_cast %2 : vector<8xf32> to vector<8x1xf32>
    %cst_2 = arith.constant 3.200000e+01 : f32
    %4 = vector.broadcast %cst_2 : f32 to vector<8x1xf32>
    %5 = arith.divf %3, %4 : vector<8x1xf32>
    %6 = vector.broadcast %5 : vector<8x1xf32> to vector<8x32xf32>
    %7 = arith.subf %1, %6 : vector<8x32xf32>
    %8 = arith.mulf %7, %7 : vector<8x32xf32>
    %cst_3 = arith.constant dense<0.000000e+00> : vector<8xf32>
    %9 = vector.multi_reduction <add>, %8, %cst_3 [1] : vector<8x32xf32> to vector<8xf32>
    %10 = vector.shape_cast %9 : vector<8xf32> to vector<8x1xf32>
    %cst_4 = arith.constant 3.200000e+01 : f32
    %11 = vector.broadcast %cst_4 : f32 to vector<8x1xf32>
    %12 = arith.divf %10, %11 : vector<8x1xf32>
    %13 = vector.broadcast %5 : vector<8x1xf32> to vector<8x32xf32>
    %14 = arith.subf %1, %13 : vector<8x32xf32>
    %cst_5 = arith.constant 9.99999974E-6 : f32
    %15 = vector.broadcast %cst_5 : f32 to vector<8x1xf32>
    %16 = arith.addf %12, %15 : vector<8x1xf32>
    %17 = math.rsqrt %16 : vector<8x1xf32>
    %18 = vector.broadcast %17 : vector<8x1xf32> to vector<8x32xf32>
    %19 = arith.mulf %14, %18 : vector<8x32xf32>
    %c0_6 = arith.constant 0 : index
    %c0_7 = arith.constant 0 : index
    %20 = vector.load %arg2[%c0_6, %c0_7] : memref<1x32xf32, #tpu.memory_space<vmem>>, vector<1x32xf32>
    %21 = vector.shape_cast %20 : vector<1x32xf32> to vector<32xf32>
    %22 = vector.shape_cast %21 : vector<32xf32> to vector<1x32xf32>
    %23 = vector.broadcast %22 : vector<1x32xf32> to vector<8x32xf32>
    %24 = arith.mulf %19, %23 : vector<8x32xf32>
    %c0_8 = arith.constant 0 : index
    %c0_9 = arith.constant 0 : index
    %25 = vector.load %arg3[%c0_8, %c0_9] : memref<1x32xf32, #tpu.memory_space<vmem>>, vector<1x32xf32>
    %26 = vector.shape_cast %25 : vector<1x32xf32> to vector<32xf32>
    %27 = vector.shape_cast %26 : vector<32xf32> to vector<1x32xf32>
    %28 = vector.broadcast %27 : vector<1x32xf32> to vector<8x32xf32>
    %29 = arith.addf %24, %28 : vector<8x32xf32>
    %c0_10 = arith.constant 0 : index
    %c0_11 = arith.constant 0 : index
    %30 = vector.load %arg4[%c0_10, %c0_11] : memref<32x96xf32, #tpu.memory_space<vmem>>, vector<32x96xf32>
    %cst_12 = arith.constant dense<0.000000e+00> : vector<8x96xf32>
    %31 = tpu.matmul %29, %30, %cst_12 {dimension_numbers = #tpu.dot_dimension_numbers<[1], [0], [0], [1], [0, 0, 1, 1], [], []>} : vector<8x32xf32>, vector<32x96xf32>, vector<8x96xf32> -> vector<8x96xf32>
    %c0_13 = arith.constant 0 : index
    %c0_14 = arith.constant 0 : index
    %32 = vector.load %arg6[%c0_13, %c0_14] : memref<8x8xf32, #tpu.memory_space<vmem>>, vector<8x8xf32>
    %cst_15 = arith.constant 0.000000e+00 : f32
    %33 = vector.broadcast %cst_15 : f32 to vector<8x32xf32>
    %34 = vector.extract_strided_slice %31 {offsets = [0, 0], sizes = [8, 8], strides = [1, 1]} : vector<8x96xf32> to vector<8x8xf32>
    %35 = vector.extract_strided_slice %31 {offsets = [0, 32], sizes = [8, 8], strides = [1, 1]} : vector<8x96xf32> to vector<8x8xf32>
    %36 = vector.extract_strided_slice %31 {offsets = [0, 64], sizes = [8, 8], strides = [1, 1]} : vector<8x96xf32> to vector<8x8xf32>
    %cst_16 = arith.constant dense<0.000000e+00> : vector<8x8xf32>
    %37 = tpu.matmul %34, %35, %cst_16 {dimension_numbers = #tpu.dot_dimension_numbers<[1], [1], [0], [0], [0, 0, 1, 0], [], []>} : vector<8x8xf32>, vector<8x8xf32>, vector<8x8xf32> -> vector<8x8xf32>
    %38 = arith.addf %37, %32 : vector<8x8xf32>
    %cst_17 = arith.constant dense<0xFF800000> : vector<8xf32>
    %39 = vector.multi_reduction <maximumf>, %38, %cst_17 [1] : vector<8x8xf32> to vector<8xf32>
    %40 = vector.shape_cast %39 : vector<8xf32> to vector<8x1xf32>
    %41 = vector.broadcast %40 : vector<8x1xf32> to vector<8x8xf32>
    %42 = arith.subf %38, %41 : vector<8x8xf32>
    %43 = math.exp %42 : vector<8x8xf32>
    %cst_18 = arith.constant dense<0.000000e+00> : vector<8xf32>
    %44 = vector.multi_reduction <add>, %43, %cst_18 [1] : vector<8x8xf32> to vector<8xf32>
    %45 = vector.shape_cast %44 : vector<8xf32> to vector<8x1xf32>
    %46 = tpu.reciprocal %45 {approx = true} : vector<8x1xf32> -> vector<8x1xf32>
    %47 = vector.broadcast %46 : vector<8x1xf32> to vector<8x8xf32>
    %48 = arith.mulf %43, %47 : vector<8x8xf32>
    %cst_19 = arith.constant dense<0.000000e+00> : vector<8x8xf32>
    %49 = tpu.matmul %48, %36, %cst_19 {dimension_numbers = #tpu.dot_dimension_numbers<[1], [0], [0], [1], [0, 0, 1, 1], [], []>} : vector<8x8xf32>, vector<8x8xf32>, vector<8x8xf32> -> vector<8x8xf32>
    %c0_20 = arith.constant 0 : index
    %c0_21 = arith.constant 0 : index
    %c0_22 = arith.constant 0 : index
    %50 = vector.load %arg5[%c0_20, %c0_21, %c0_22] : memref<4x8x32xf32, #tpu.memory_space<vmem>>, vector<1x8x32xf32>
    %51 = vector.shape_cast %50 : vector<1x8x32xf32> to vector<8x32xf32>
    %cst_23 = arith.constant dense<0.000000e+00> : vector<8x32xf32>
    %52 = tpu.matmul %49, %51, %cst_23 {dimension_numbers = #tpu.dot_dimension_numbers<[1], [0], [0], [1], [0, 0, 1, 1], [], []>} : vector<8x8xf32>, vector<8x32xf32>, vector<8x32xf32> -> vector<8x32xf32>
    %53 = arith.addf %33, %52 : vector<8x32xf32>
    %54 = vector.extract_strided_slice %31 {offsets = [0, 8], sizes = [8, 8], strides = [1, 1]} : vector<8x96xf32> to vector<8x8xf32>
    %55 = vector.extract_strided_slice %31 {offsets = [0, 40], sizes = [8, 8], strides = [1, 1]} : vector<8x96xf32> to vector<8x8xf32>
    %56 = vector.extract_strided_slice %31 {offsets = [0, 72], sizes = [8, 8], strides = [1, 1]} : vector<8x96xf32> to vector<8x8xf32>
    %cst_24 = arith.constant dense<0.000000e+00> : vector<8x8xf32>
    %57 = tpu.matmul %54, %55, %cst_24 {dimension_numbers = #tpu.dot_dimension_numbers<[1], [1], [0], [0], [0, 0, 1, 0], [], []>} : vector<8x8xf32>, vector<8x8xf32>, vector<8x8xf32> -> vector<8x8xf32>
    %58 = arith.addf %57, %32 : vector<8x8xf32>
    %cst_25 = arith.constant dense<0xFF800000> : vector<8xf32>
    %59 = vector.multi_reduction <maximumf>, %58, %cst_25 [1] : vector<8x8xf32> to vector<8xf32>
    %60 = vector.shape_cast %59 : vector<8xf32> to vector<8x1xf32>
    %61 = vector.broadcast %60 : vector<8x1xf32> to vector<8x8xf32>
    %62 = arith.subf %58, %61 : vector<8x8xf32>
    %63 = math.exp %62 : vector<8x8xf32>
    %cst_26 = arith.constant dense<0.000000e+00> : vector<8xf32>
    %64 = vector.multi_reduction <add>, %63, %cst_26 [1] : vector<8x8xf32> to vector<8xf32>
    %65 = vector.shape_cast %64 : vector<8xf32> to vector<8x1xf32>
    %66 = tpu.reciprocal %65 {approx = true} : vector<8x1xf32> -> vector<8x1xf32>
    %67 = vector.broadcast %66 : vector<8x1xf32> to vector<8x8xf32>
    %68 = arith.mulf %63, %67 : vector<8x8xf32>
    %cst_27 = arith.constant dense<0.000000e+00> : vector<8x8xf32>
    %69 = tpu.matmul %68, %56, %cst_27 {dimension_numbers = #tpu.dot_dimension_numbers<[1], [0], [0], [1], [0, 0, 1, 1], [], []>} : vector<8x8xf32>, vector<8x8xf32>, vector<8x8xf32> -> vector<8x8xf32>
    %c1 = arith.constant 1 : index
    %c0_28 = arith.constant 0 : index
    %c0_29 = arith.constant 0 : index
    %70 = vector.load %arg5[%c1, %c0_28, %c0_29] : memref<4x8x32xf32, #tpu.memory_space<vmem>>, vector<1x8x32xf32>
    %71 = vector.shape_cast %70 : vector<1x8x32xf32> to vector<8x32xf32>
    %cst_30 = arith.constant dense<0.000000e+00> : vector<8x32xf32>
    %72 = tpu.matmul %69, %71, %cst_30 {dimension_numbers = #tpu.dot_dimension_numbers<[1], [0], [0], [1], [0, 0, 1, 1], [], []>} : vector<8x8xf32>, vector<8x32xf32>, vector<8x32xf32> -> vector<8x32xf32>
    %73 = arith.addf %53, %72 : vector<8x32xf32>
    %74 = vector.extract_strided_slice %31 {offsets = [0, 16], sizes = [8, 8], strides = [1, 1]} : vector<8x96xf32> to vector<8x8xf32>
    %75 = vector.extract_strided_slice %31 {offsets = [0, 48], sizes = [8, 8], strides = [1, 1]} : vector<8x96xf32> to vector<8x8xf32>
    %76 = vector.extract_strided_slice %31 {offsets = [0, 80], sizes = [8, 8], strides = [1, 1]} : vector<8x96xf32> to vector<8x8xf32>
    %cst_31 = arith.constant dense<0.000000e+00> : vector<8x8xf32>
    %77 = tpu.matmul %74, %75, %cst_31 {dimension_numbers = #tpu.dot_dimension_numbers<[1], [1], [0], [0], [0, 0, 1, 0], [], []>} : vector<8x8xf32>, vector<8x8xf32>, vector<8x8xf32> -> vector<8x8xf32>
    %78 = arith.addf %77, %32 : vector<8x8xf32>
    %cst_32 = arith.constant dense<0xFF800000> : vector<8xf32>
    %79 = vector.multi_reduction <maximumf>, %78, %cst_32 [1] : vector<8x8xf32> to vector<8xf32>
    %80 = vector.shape_cast %79 : vector<8xf32> to vector<8x1xf32>
    %81 = vector.broadcast %80 : vector<8x1xf32> to vector<8x8xf32>
    %82 = arith.subf %78, %81 : vector<8x8xf32>
    %83 = math.exp %82 : vector<8x8xf32>
    %cst_33 = arith.constant dense<0.000000e+00> : vector<8xf32>
    %84 = vector.multi_reduction <add>, %83, %cst_33 [1] : vector<8x8xf32> to vector<8xf32>
    %85 = vector.shape_cast %84 : vector<8xf32> to vector<8x1xf32>
    %86 = tpu.reciprocal %85 {approx = true} : vector<8x1xf32> -> vector<8x1xf32>
    %87 = vector.broadcast %86 : vector<8x1xf32> to vector<8x8xf32>
    %88 = arith.mulf %83, %87 : vector<8x8xf32>
    %cst_34 = arith.constant dense<0.000000e+00> : vector<8x8xf32>
    %89 = tpu.matmul %88, %76, %cst_34 {dimension_numbers = #tpu.dot_dimension_numbers<[1], [0], [0], [1], [0, 0, 1, 1], [], []>} : vector<8x8xf32>, vector<8x8xf32>, vector<8x8xf32> -> vector<8x8xf32>
    %c2 = arith.constant 2 : index
    %c0_35 = arith.constant 0 : index
    %c0_36 = arith.constant 0 : index
    %90 = vector.load %arg5[%c2, %c0_35, %c0_36] : memref<4x8x32xf32, #tpu.memory_space<vmem>>, vector<1x8x32xf32>
    %91 = vector.shape_cast %90 : vector<1x8x32xf32> to vector<8x32xf32>
    %cst_37 = arith.constant dense<0.000000e+00> : vector<8x32xf32>
    %92 = tpu.matmul %89, %91, %cst_37 {dimension_numbers = #tpu.dot_dimension_numbers<[1], [0], [0], [1], [0, 0, 1, 1], [], []>} : vector<8x8xf32>, vector<8x32xf32>, vector<8x32xf32> -> vector<8x32xf32>
    %93 = arith.addf %73, %92 : vector<8x32xf32>
    %94 = vector.extract_strided_slice %31 {offsets = [0, 24], sizes = [8, 8], strides = [1, 1]} : vector<8x96xf32> to vector<8x8xf32>
    %95 = vector.extract_strided_slice %31 {offsets = [0, 56], sizes = [8, 8], strides = [1, 1]} : vector<8x96xf32> to vector<8x8xf32>
    %96 = vector.extract_strided_slice %31 {offsets = [0, 88], sizes = [8, 8], strides = [1, 1]} : vector<8x96xf32> to vector<8x8xf32>
    %cst_38 = arith.constant dense<0.000000e+00> : vector<8x8xf32>
    %97 = tpu.matmul %94, %95, %cst_38 {dimension_numbers = #tpu.dot_dimension_numbers<[1], [1], [0], [0], [0, 0, 1, 0], [], []>} : vector<8x8xf32>, vector<8x8xf32>, vector<8x8xf32> -> vector<8x8xf32>
    %98 = arith.addf %97, %32 : vector<8x8xf32>
    %cst_39 = arith.constant dense<0xFF800000> : vector<8xf32>
    %99 = vector.multi_reduction <maximumf>, %98, %cst_39 [1] : vector<8x8xf32> to vector<8xf32>
    %100 = vector.shape_cast %99 : vector<8xf32> to vector<8x1xf32>
    %101 = vector.broadcast %100 : vector<8x1xf32> to vector<8x8xf32>
    %102 = arith.subf %98, %101 : vector<8x8xf32>
    %103 = math.exp %102 : vector<8x8xf32>
    %cst_40 = arith.constant dense<0.000000e+00> : vector<8xf32>
    %104 = vector.multi_reduction <add>, %103, %cst_40 [1] : vector<8x8xf32> to vector<8xf32>
    %105 = vector.shape_cast %104 : vector<8xf32> to vector<8x1xf32>
    %106 = tpu.reciprocal %105 {approx = true} : vector<8x1xf32> -> vector<8x1xf32>
    %107 = vector.broadcast %106 : vector<8x1xf32> to vector<8x8xf32>
    %108 = arith.mulf %103, %107 : vector<8x8xf32>
    %cst_41 = arith.constant dense<0.000000e+00> : vector<8x8xf32>
    %109 = tpu.matmul %108, %96, %cst_41 {dimension_numbers = #tpu.dot_dimension_numbers<[1], [0], [0], [1], [0, 0, 1, 1], [], []>} : vector<8x8xf32>, vector<8x8xf32>, vector<8x8xf32> -> vector<8x8xf32>
    %c3 = arith.constant 3 : index
    %c0_42 = arith.constant 0 : index
    %c0_43 = arith.constant 0 : index
    %110 = vector.load %arg5[%c3, %c0_42, %c0_43] : memref<4x8x32xf32, #tpu.memory_space<vmem>>, vector<1x8x32xf32>
    %111 = vector.shape_cast %110 : vector<1x8x32xf32> to vector<8x32xf32>
    %cst_44 = arith.constant dense<0.000000e+00> : vector<8x32xf32>
    %112 = tpu.matmul %109, %111, %cst_44 {dimension_numbers = #tpu.dot_dimension_numbers<[1], [0], [0], [1], [0, 0, 1, 1], [], []>} : vector<8x8xf32>, vector<8x32xf32>, vector<8x32xf32> -> vector<8x32xf32>
    %113 = arith.addf %93, %112 : vector<8x32xf32>
    %114 = vector.shape_cast %113 : vector<8x32xf32> to vector<1x8x32xf32>
    %c0_45 = arith.constant 0 : index
    %c0_46 = arith.constant 0 : index
    %c0_47 = arith.constant 0 : index
    %115 = vector.load %arg7[%c0_45, %c0_46, %c0_47] : memref<1x8x32xf32, #tpu.memory_space<vmem>>, vector<1x8x32xf32>
    tpu.vector_store %arg7[%c0_45, %c0_46, %c0_47], %114 {strides = array<i32>} : memref<1x8x32xf32, #tpu.memory_space<vmem>>, vector<1x8x32xf32>,
    return
  }
  func.func @transform_0(%arg0: i32) -> (i32, i32, i32) {
    %c0_i32 = arith.constant 0 : i32
    %c0_i32_0 = arith.constant 0 : i32
    %c0_i32_1 = arith.constant 0 : i32
    return %arg0, %c0_i32, %c0_i32_0 : i32, i32, i32
  }
  func.func @transform_1(%arg0: i32) -> (i32, i32) {
    %c0_i32 = arith.constant 0 : i32
    %c0_i32_0 = arith.constant 0 : i32
    %c0_i32_1 = arith.constant 0 : i32
    return %c0_i32, %c0_i32_0 : i32, i32
  }
  func.func @transform_2(%arg0: i32) -> (i32, i32) {
    %c0_i32 = arith.constant 0 : i32
    %c0_i32_0 = arith.constant 0 : i32
    %c0_i32_1 = arith.constant 0 : i32
    return %c0_i32, %c0_i32_0 : i32, i32
  }
  func.func @transform_3(%arg0: i32) -> (i32, i32) {
    %c0_i32 = arith.constant 0 : i32
    %c0_i32_0 = arith.constant 0 : i32
    %c0_i32_1 = arith.constant 0 : i32
    return %c0_i32, %c0_i32_0 : i32, i32
  }
  func.func @transform_4(%arg0: i32) -> (i32, i32, i32) {
    %c0_i32 = arith.constant 0 : i32
    %c0_i32_0 = arith.constant 0 : i32
    %c0_i32_1 = arith.constant 0 : i32
    %c0_i32_2 = arith.constant 0 : i32
    return %c0_i32, %c0_i32_0, %c0_i32_1 : i32, i32, i32
  }
  func.func @transform_5(%arg0: i32) -> (i32, i32) {
    %c0_i32 = arith.constant 0 : i32
    %c0_i32_0 = arith.constant 0 : i32
    %c0_i32_1 = arith.constant 0 : i32
    return %c0_i32, %c0_i32_0 : i32, i32
  }
  func.func @transform_6(%arg0: i32) -> (i32, i32, i32) {
    %c0_i32 = arith.constant 0 : i32
    %c0_i32_0 = arith.constant 0 : i32
    %c0_i32_1 = arith.constant 0 : i32
    return %arg0, %c0_i32, %c0_i32_0 : i32, i32, i32
  }
}

</mosaic_0001>

<llo_original>
// kernel: tpu_custom_call.1
$region0: #{tpu_custom_call.1}
  #allocation0 [shape = 'u32[]', space=smem, size = 0x4, offset = 0x4, fixed_abs, tag = 'smem constant byte address 0x4 - core index']
  #allocation1 [shape = 'u32[72,128]{1,0:T(1,128)}', space=vmem, size = 0x9000, scoped, tag = 'internal scratch']
  %s0 = inlined_call_operand.hbm [shape: f32[2,8,32], index: 0, kind: input, shape index: {}]
  %s1 = inlined_call_operand.hbm [shape: f32[1,32], index: 1, kind: input, shape index: {}]
  %s2 = inlined_call_operand.vmem [shape: f32[1,32], index: 2, kind: input, shape index: {}]
  %s3 = inlined_call_operand.hbm [shape: f32[32,96], index: 3, kind: input, shape index: {}]
  %s4 = inlined_call_operand.hbm [shape: f32[4,8,32], index: 4, kind: input, shape index: {}]
  %s5 = inlined_call_operand.hbm [shape: f32[8,8], index: 5, kind: input, shape index: {}]
  %s6 = inlined_call_operand.hbm [shape: f32[2,8,32], index: 6, kind: output, shape index: {}]
  %s7 = sld [smem:[#allocation0]]
  $region77: #{tpu_custom_call.1} parent=0
    _
  %s9 = ssub.s32 1, %s7
  %s10 = scalar_select 0, %s9, %s7
  $region1: #{tpu_custom_call.1} parent=0
    #allocation2 [shape = 'u8[8192]{0}', space=vmem, size = 0x2000, scoped, tag = 'input window, operand 0']
    #allocation3 [shape = 's32[2]{0}', space=sflag, size = 0x8, scoped, tag = 'scoped memory for tpu_custom_call.1']
    #allocation4 [shape = 's32[2]{0}', space=sflag, size = 0x8, scoped, tag = 'scoped memory for tpu_custom_call.1']
    #allocation5 [shape = 'u8[512]{0}', space=vmem, size = 0x400, scoped, tag = 'input window, operand 1, single buffered']
    #allocation6 [shape = 's32[1]{0}', space=sflag, size = 0x4, scoped, tag = 'scoped memory for tpu_custom_call.1']
    #allocation7 [shape = 'u8[16384]{0}', space=vmem, size = 0x4000, scoped, tag = 'input window, operand 3, single buffered']
    #allocation8 [shape = 'u8[16384]{0}', space=vmem, size = 0x4000, scoped, tag = 'input window, operand 4, single buffered']
    #allocation9 [shape = 's32[1]{0}', space=sflag, size = 0x4, scoped, tag = 'scoped memory for tpu_custom_call.1']
    #allocation10 [shape = 'u8[4096]{0}', space=vmem, size = 0x1000, scoped, tag = 'input window, operand 5, single buffered']
    #allocation11 [shape = 'u8[8192]{0}', space=vmem, size = 0x2000, scoped, tag = 'output window, operand 0']
    %11 = vsyncpa [#allocation3], 0
    %s12 = scalar_lea.sflag [#allocation3], 1
    %13 = vsyncpa %s12, 0
    %14 = vsyncpa [#allocation6], 0
    %15 = vsyncpa [#allocation9], 0
    %16 = vsyncpa [#allocation4], 0
    %s17 = scalar_lea.sflag [#allocation4], 1
    %18 = vsyncpa %s17, 0
    loop: start=0, step=1, limit=4
    $region2: #{tpu_custom_call.1} parent=1 // loop_pre_header
      _
    $region3: #{tpu_custom_call.1} parent=1 // loop_header
      %s20 = sphi 0, %s24
      %p21 = scmp.ge.s32.totalorder %s20, 4
      %s30 = sphi 0, %s32
      %s33 = sphi 0, %s30
      %s34 = sphi 0, %s33
      %s50 = sphi 0, %s34
      %s54 = sphi 0, %s54
      %s56 = sphi 0, %s54
      %s57 = sphi 0, %s56
      %s71 = sphi 0, %s57
      %s75 = sphi 0, %s75
      %s77 = sphi 0, %s75
      %s78 = sphi 0, %s77
      %s92 = sphi 0, %s78
      %s96 = sphi 0, %s96
      %s98 = sphi 0, %s96
      %s99 = sphi 0, %s98
      %s113 = sphi 0, %s99
      %s117 = sphi 0, %s117
      %s119 = sphi 0, %s117
      %s120 = sphi 0, %s119
      %s134 = sphi 0, %s120
      %s138 = sphi 0, %s138
      %s140 = sphi 0, %s138
      %s141 = sphi 0, %s140
      %s155 = sphi 0, %s141
      %s161 = sphi 0, %s163
      %s164 = sphi 0, %s161
      %s165 = sphi 0, %s164
      %s181 = sphi 0, %s165
    $region4: #{tpu_custom_call.1} parent=1 // loop_header_branch
      %23 = sbr.rel (%p21) target = $region8
    $region5: #{tpu_custom_call.1} parent=1 // loop_body
      %s25 = ssub.s32 %s20, 1
      %s26 = ssub.s32 %s20, 2
      %s27 = sadd.s32 %s20, 1
      %s28 = ssub.s32 %s20, %s27
      %p29 = scmp.eq.s32.totalorder %s28, 0
      %s31 = sadd.s32 %s30, 1
      %s32 = scalar_select %p29, %s30, %s31
      %p35 = pneg %p29
      %p36 = scmp.eq.s32.totalorder %s20, 1
      %p37 = por %p35, %p36
      %p38 = scmp.ne.s32.totalorder %s30, %s33
      %p39 = scmp.eq.s32.totalorder %s20, 0
      %p40 = por %p38, %p39
      %p41 = scmp.ne.s32.totalorder %s30, %s33
      %p42 = scmp.eq.s32.totalorder %s25, 1
      %p43 = por %p41, %p42
      %p44 = scmp.ne.s32.totalorder %s33, %s34
      %p45 = scmp.eq.s32.totalorder %s25, 0
      %p46 = por %p44, %p45
      %p47 = scmp.ne.s32.totalorder %s33, %s34
      %p48 = scmp.eq.s32.totalorder %s26, 1
      %p49 = por %p47, %p48
      %p51 = scmp.ne.s32.totalorder %s34, %s50
      %p52 = scmp.eq.s32.totalorder %s26, 0
      %p53 = por %p51, %p52
      %s55 = sadd.s32 %s54, 1
      %p58 = scmp.eq.s32.totalorder %s20, 1
      %p59 = scmp.ne.s32.totalorder %s54, %s56
      %p60 = scmp.eq.s32.totalorder %s20, 0
      %p61 = por %p59, %p60
      %p62 = scmp.ne.s32.totalorder %s54, %s56
      %p63 = scmp.eq.s32.totalorder %s25, 1
      %p64 = por %p62, %p63
      %p65 = scmp.ne.s32.totalorder %s56, %s57
      %p66 = scmp.eq.s32.totalorder %s25, 0
      %p67 = por %p65, %p66
      %p68 = scmp.ne.s32.totalorder %s56, %s57
      %p69 = scmp.eq.s32.totalorder %s26, 1
      %p70 = por %p68, %p69
      %p72 = scmp.ne.s32.totalorder %s57, %s71
      %p73 = scmp.eq.s32.totalorder %s26, 0
      %p74 = por %p72, %p73
      %s76 = sadd.s32 %s75, 1
      %p79 = scmp.eq.s32.totalorder %s20, 1
      %p80 = scmp.ne.s32.totalorder %s75, %s77
      %p81 = scmp.eq.s32.totalorder %s20, 0
      %p82 = por %p80, %p81
      %p83 = scmp.ne.s32.totalorder %s75, %s77
      %p84 = scmp.eq.s32.totalorder %s25, 1
      %p85 = por %p83, %p84
      %p86 = scmp.ne.s32.totalorder %s77, %s78
      %p87 = scmp.eq.s32.totalorder %s25, 0
      %p88 = por %p86, %p87
      %p89 = scmp.ne.s32.totalorder %s77, %s78
      %p90 = scmp.eq.s32.totalorder %s26, 1
      %p91 = por %p89, %p90
      %p93 = scmp.ne.s32.totalorder %s78, %s92
      %p94 = scmp.eq.s32.totalorder %s26, 0
      %p95 = por %p93, %p94
      %s97 = sadd.s32 %s96, 1
      %p100 = scmp.eq.s32.totalorder %s20, 1
      %p101 = scmp.ne.s32.totalorder %s96, %s98
      %p102 = scmp.eq.s32.totalorder %s20, 0
      %p103 = por %p101, %p102
      %p104 = scmp.ne.s32.totalorder %s96, %s98
      %p105 = scmp.eq.s32.totalorder %s25, 1
      %p106 = por %p104, %p105
      %p107 = scmp.ne.s32.totalorder %s98, %s99
      %p108 = scmp.eq.s32.totalorder %s25, 0
      %p109 = por %p107, %p108
      %p110 = scmp.ne.s32.totalorder %s98, %s99
      %p111 = scmp.eq.s32.totalorder %s26, 1
      %p112 = por %p110, %p111
      %p114 = scmp.ne.s32.totalorder %s99, %s113
      %p115 = scmp.eq.s32.totalorder %s26, 0
      %p116 = por %p114, %p115
      %s118 = sadd.s32 %s117, 1
      %p121 = scmp.eq.s32.totalorder %s20, 1
      %p122 = scmp.ne.s32.totalorder %s117, %s119
      %p123 = scmp.eq.s32.totalorder %s20, 0
      %p124 = por %p122, %p123
      %p125 = scmp.ne.s32.totalorder %s117, %s119
      %p126 = scmp.eq.s32.totalorder %s25, 1
      %p127 = por %p125, %p126
      %p128 = scmp.ne.s32.totalorder %s119, %s120
      %p129 = scmp.eq.s32.totalorder %s25, 0
      %p130 = por %p128, %p129
      %p131 = scmp.ne.s32.totalorder %s119, %s120
      %p132 = scmp.eq.s32.totalorder %s26, 1
      %p133 = por %p131, %p132
      %p135 = scmp.ne.s32.totalorder %s120, %s134
      %p136 = scmp.eq.s32.totalorder %s26, 0
      %p137 = por %p135, %p136
      %s139 = sadd.s32 %s138, 1
      %p142 = scmp.eq.s32.totalorder %s20, 1
      %p143 = scmp.ne.s32.totalorder %s138, %s140
      %p144 = scmp.eq.s32.totalorder %s20, 0
      %p145 = por %p143, %p144
      %p146 = scmp.ne.s32.totalorder %s138, %s140
      %p147 = scmp.eq.s32.totalorder %s25, 1
      %p148 = por %p146, %p147
      %p149 = scmp.ne.s32.totalorder %s140, %s141
      %p150 = scmp.eq.s32.totalorder %s25, 0
      %p151 = por %p149, %p150
      %p152 = scmp.ne.s32.totalorder %s140, %s141
      %p153 = scmp.eq.s32.totalorder %s26, 1
      %p154 = por %p152, %p153
      %p156 = scmp.ne.s32.totalorder %s141, %s155
      %p157 = scmp.eq.s32.totalorder %s26, 0
      %p158 = por %p156, %p157
      %s159 = ssub.s32 %s20, %s27
      %p160 = scmp.eq.s32.totalorder %s159, 0
      %s162 = sadd.s32 %s161, 1
      %s163 = scalar_select %p160, %s161, %s162
      %p166 = pneg %p160
      %p167 = scmp.eq.s32.totalorder %s20, 1
      %p168 = por %p166, %p167
      %p169 = scmp.ne.s32.totalorder %s161, %s164
      %p170 = scmp.eq.s32.totalorder %s20, 0
      %p171 = por %p169, %p170
      %p172 = scmp.ne.s32.totalorder %s161, %s164
      %p173 = scmp.eq.s32.totalorder %s25, 1
      %p174 = por %p172, %p173
      %p175 = scmp.ne.s32.totalorder %s164, %s165
      %p176 = scmp.eq.s32.totalorder %s25, 0
      %p177 = por %p175, %p176
      %p178 = scmp.ne.s32.totalorder %s164, %s165
      %p179 = scmp.eq.s32.totalorder %s26, 1
      %p180 = por %p178, %p179
      %p182 = scmp.ne.s32.totalorder %s165, %s181
      %p183 = scmp.eq.s32.totalorder %s26, 0
      %p184 = por %p182, %p183
      %p185 = scmp.le.s32.totalorder 1, %s20
      %p186 = scmp.lt.s32.totalorder %s20, 3
      %p187 = pnand %p185, %p186
      %p188 = pneg %p187
      // Predicated region
      $region9: #{tpu_custom_call.1} parent=5 // pred_check
        _
      $region10: #{tpu_custom_call.1} parent=5 // pred_check_branch
        %190 = sbr.rel (%p187) target = $region12
      $region11: #{tpu_custom_call.1} parent=5 // pred_region
        %s191 = ssub.s32 %s20, 1
        // Predicated region
        $region13: #{tpu_custom_call.1} parent=11 // pred_check
          %p192 = pneg %p67
        $region14: #{tpu_custom_call.1} parent=11 // pred_check_branch
          %194 = sbr.rel (%p192) target = $region16
        $region15: #{tpu_custom_call.1} parent=11 // pred_region
          %196 = vsyncadd [#allocation6], 0
          %s198 = sshll.u32 %s1, 4
          %s199 = int_to_ptr.hbm [resolvable:$true] %s198
          %s200 = sshll.u32 [#allocation5], 4
          %s201 = int_to_ptr.vmem [resolvable:$true] %s200
          %203 = dma.hbm_to_vmem [thread:$0]  %s199, 16, %s201, [#allocation6]
        $region16: #{tpu_custom_call.1} parent=11 // pred_fallthru
          _
        // Predicated region
        $region17: #{tpu_custom_call.1} parent=11 // pred_check
          %p204 = pneg %p88
        $region18: #{tpu_custom_call.1} parent=11 // pred_check_branch
          %206 = sbr.rel (%p204) target = $region20
        $region19: #{tpu_custom_call.1} parent=11 // pred_region
          _
        $region20: #{tpu_custom_call.1} parent=11 // pred_fallthru
          _
        // Predicated region
        $region21: #{tpu_custom_call.1} parent=11 // pred_check
          %p207 = pneg %p109
        $region22: #{tpu_custom_call.1} parent=11 // pred_check_branch
          %209 = sbr.rel (%p207) target = $region24
        $region23: #{tpu_custom_call.1} parent=11 // pred_region
          %211 = vsyncadd [#allocation6], 0
          %s212 = sshll.u32 %s3, 4
          %s213 = int_to_ptr.hbm [resolvable:$true] %s212
          %s214 = sshll.u32 [#allocation7], 4
          %s215 = int_to_ptr.vmem [resolvable:$true] %s214
          %220 = dma.hbm_to_vmem [thread:$0]  %s213, 512, %s215, [#allocation6], 128, 128, 8
        $region24: #{tpu_custom_call.1} parent=11 // pred_fallthru
          _
        // Predicated region
        $region25: #{tpu_custom_call.1} parent=11 // pred_check
          %p221 = pneg %p130
        $region26: #{tpu_custom_call.1} parent=11 // pred_check_branch
          %223 = sbr.rel (%p221) target = $region28
        $region27: #{tpu_custom_call.1} parent=11 // pred_region
          %225 = vsyncadd [#allocation9], 0
          %s226 = sshll.u32 %s4, 4
          %s227 = int_to_ptr.hbm [resolvable:$true] %s226
          %s228 = sshll.u32 [#allocation8], 4
          %s229 = int_to_ptr.vmem [resolvable:$true] %s228
          %234 = dma.hbm_to_vmem [thread:$0]  %s227, 512, %s229, [#allocation9], 128, 128, 8
        $region28: #{tpu_custom_call.1} parent=11 // pred_fallthru
          _
        // Predicated region
        $region29: #{tpu_custom_call.1} parent=11 // pred_check
          %p235 = pneg %p151
        $region30: #{tpu_custom_call.1} parent=11 // pred_check_branch
          %237 = sbr.rel (%p235) target = $region32
        $region31: #{tpu_custom_call.1} parent=11 // pred_region
          %239 = vsyncadd [#allocation9], 0
          %s241 = sshll.u32 %s5, 4
          %s242 = int_to_ptr.hbm [resolvable:$true] %s241
          %s243 = sshll.u32 [#allocation10], 4
          %s244 = int_to_ptr.vmem [resolvable:$true] %s243
          %246 = dma.hbm_to_vmem [thread:$0]  %s242, 128, %s244, [#allocation9]
        $region32: #{tpu_custom_call.1} parent=11 // pred_fallthru
          _
      $region12: #{tpu_custom_call.1} parent=5 // pred_fallthru
        _
      %p247 = scmp.lt.s32.totalorder %s20, 2
      // Predicated region
      $region33: #{tpu_custom_call.1} parent=5 // pred_check
        %p248 = pneg %p247
      $region34: #{tpu_custom_call.1} parent=5 // pred_check_branch
        %250 = sbr.rel (%p248) target = $region36
      $region35: #{tpu_custom_call.1} parent=5 // pred_region
        // Predicated region
        $region37: #{tpu_custom_call.1} parent=35 // pred_check
          %p251 = pneg %p40
        $region38: #{tpu_custom_call.1} parent=35 // pred_check_branch
          %253 = sbr.rel (%p251) target = $region40
        $region39: #{tpu_custom_call.1} parent=35 // pred_region
          %s254 = sand.u32 %s30, 1
          %s255 = scalar_lea.sflag [#allocation3], %s254
          %s256 = sand.u32 %s30, 1
          %s257 = smul.addr %s256, 8
          %s258 = scalar_lea.vmem [#allocation2], %s257
          %260 = vsyncadd %s255, 0
          %s261 = smul.addr %s20, 8
          %s262 = scalar_lea.hbm %s0, %s261
          %s264 = sshll.u32 %s262, 4
          %s265 = int_to_ptr.hbm [resolvable:$true] %s264
          %s266 = sshll.u32 %s258, 4
          %s267 = int_to_ptr.vmem [resolvable:$true] %s266
          %269 = dma.hbm_to_vmem [thread:$0]  %s265, 128, %s267, %s255
        $region40: #{tpu_custom_call.1} parent=35 // pred_fallthru
          _
      $region36: #{tpu_custom_call.1} parent=5 // pred_fallthru
        _
      %p270 = scmp.le.s32.totalorder 1, %s20
      %p271 = scmp.lt.s32.totalorder %s20, 3
      %p272 = pnand %p270, %p271
      %p273 = pneg %p272
      // Predicated region
      $region41: #{tpu_custom_call.1} parent=5 // pred_check
        _
      $region42: #{tpu_custom_call.1} parent=5 // pred_check_branch
        %275 = sbr.rel (%p272) target = $region44
      $region43: #{tpu_custom_call.1} parent=5 // pred_region
        %s276 = ssub.s32 %s20, 1
        %s277 = sand.u32 %s33, 1
        %s278 = scalar_lea.sflag [#allocation3], %s277
        %s279 = sand.u32 %s33, 1
        %s280 = smul.addr %s279, 8
        %s281 = scalar_lea.vmem [#allocation2], %s280
        // Predicated region
        $region45: #{tpu_custom_call.1} parent=43 // pred_check
          %p282 = pneg %p46
        $region46: #{tpu_custom_call.1} parent=43 // pred_check_branch
          %284 = sbr.rel (%p282) target = $region48
        $region47: #{tpu_custom_call.1} parent=43 // pred_region
          %286 = dma.done %s278, 128
        $region48: #{tpu_custom_call.1} parent=43 // pred_fallthru
          _
        // Predicated region
        $region49: #{tpu_custom_call.1} parent=43 // pred_check
          %p287 = pneg %p67
        $region50: #{tpu_custom_call.1} parent=43 // pred_check_branch
          %289 = sbr.rel (%p287) target = $region52
        $region51: #{tpu_custom_call.1} parent=43 // pred_region
          %291 = dma.done [#allocation6], 16
        $region52: #{tpu_custom_call.1} parent=43 // pred_fallthru
          _
        // Predicated region
        $region53: #{tpu_custom_call.1} parent=43 // pred_check
          %p292 = pneg %p109
        $region54: #{tpu_custom_call.1} parent=43 // pred_check_branch
          %294 = sbr.rel (%p292) target = $region56
        $region55: #{tpu_custom_call.1} parent=43 // pred_region
          %296 = dma.done [#allocation6], 512
        $region56: #{tpu_custom_call.1} parent=43 // pred_fallthru
          _
        // Predicated region
        $region57: #{tpu_custom_call.1} parent=43 // pred_check
          %p297 = pneg %p130
        $region58: #{tpu_custom_call.1} parent=43 // pred_check_branch
          %299 = sbr.rel (%p297) target = $region60
        $region59: #{tpu_custom_call.1} parent=43 // pred_region
          %301 = dma.done [#allocation9], 512
        $region60: #{tpu_custom_call.1} parent=43 // pred_fallthru
          _
        // Predicated region
        $region61: #{tpu_custom_call.1} parent=43 // pred_check
          %p302 = pneg %p151
        $region62: #{tpu_custom_call.1} parent=43 // pred_check_branch
          %304 = sbr.rel (%p302) target = $region64
        $region63: #{tpu_custom_call.1} parent=43 // pred_region
          %306 = dma.done [#allocation9], 128
        $region64: #{tpu_custom_call.1} parent=43 // pred_fallthru
          _
        %s307 = sand.u32 %s33, 1
        %s308 = scalar_lea.sflag [#allocation3], %s307
        %s309 = sand.u32 %s33, 1
        %s310 = smul.addr %s309, 8
        %s311 = scalar_lea.vmem [#allocation2], %s310
        %p312 = pneg %p46
        %p313 = pneg %p43
        %p314 = pneg %p67
        %p315 = pneg %p64
        %p316 = pneg %p88
        %p317 = pneg %p85
        %p318 = pneg %p109
        %p319 = pneg %p106
        %p320 = pneg %p130
        %p321 = pneg %p127
        %p322 = pneg %p151
        %p323 = pneg %p148
        %p324 = pneg %p177
        %p325 = pneg %p174
        %s326 = sand.u32 %s164, 1
        %s327 = scalar_lea.sflag [#allocation4], %s326
        %s328 = sand.u32 %s164, 1
        %s329 = smul.addr %s328, 8
        %s330 = scalar_lea.vmem [#allocation11], %s329
        %v331 = vld [vmem:[%s281] sm:$0xff]
        %vm332 = vcmask 261120
        %v333 = vsel %vm332, %v331, 0.0
        %334 = vadd.xlane.f32.xlu0 %v333
        %v335 = vpop.xlane.xlu0 %334
        %v336 = vrcp.pop 32.0
        %v337 = vmul.f32 32.0, %v336
        %v338 = vsub.f32 1.0, %v337
        %v339 = vmul.f32 %v336, %v338
        %v340 = vadd.f32 %v336, %v339
        %vm341 = vweird.f32 %v336
        %v342 = vsel %vm341, %v336, %v340
        %v343 = vmul.f32 %v335, %v342
        %v344 = vsub.f32 %v331, %v343
        %v345 = vmul.f32 %v344, %v344
        %v346 = vsel %vm332, %v345, 0.0
        %347 = vadd.xlane.f32.xlu0 %v346
        %v348 = vpop.xlane.xlu0 %347
        %v349 = vmul.f32 %v348, %v342
        %v350 = vadd.f32 %v349, 1e-05
        %v351 = vrsqrt.pop %v350
        %v352 = vmul.f32 %v351, %v350
        %v353 = vmul.f32 %v352, %v351
        %v354 = vmul.f32 0.5, %v353
        %v355 = vsub.f32 1.5, %v354
        %v356 = vmul.f32 %v351, %v355
        %vm357 = vweird.f32 %v350
        %vm358 = vweird.f32 %v351
        %vm359 = vmor %vm357, %vm358
        %v360 = vsel %vm359, %v351, %v356
        %v361 = vmul.f32 %v344, %v360
        %v362 = vld [vmem:[#allocation5] sm:$0x1]
        %v364 = vperm.slane %v362, 0
        %v366 = vmul.f32 %v361, %v364
        %v367 = vld [vmem:[%s2] sm:$0x1]
        %v369 = vperm.slane %v367, 0
        %v371 = vadd.f32 %v366, %v369
        %v372 = vld [vmem:[#allocation7] sm:$0xff]
        %v373 = vld [vmem:[#allocation7 + $0x8] sm:$0xff]
        %v374 = vld [vmem:[#allocation7 + $0x10] sm:$0xff]
        %v375 = vld [vmem:[#allocation7 + $0x18] sm:$0xff]
        %v377 = vsel %vm332, %v371, 0
        %379 = vmatpush.msra.mxu0 0.0
        %380 = vmatpush.msra.mxu0 0.0
        %381 = vmatpush.msra.mxu0 0.0
        %382 = vmatpush.msra.mxu0 0.0
        %383 = vmatpush.msra.mxu0 0.0
        %384 = vmatpush.msra.mxu0 0.0
        %385 = vmatpush.msra.mxu0 0.0
        %386 = vmatpush.msra.mxu0 0.0
        %387 = vmatpush.msra.mxu0 0.0
        %388 = vmatpush.msra.mxu0 0.0
        %389 = vmatpush.msra.mxu0 0.0
        %390 = vmatpush.msra.mxu0 0.0
        %391 = vmatpush.msra.mxu0 %v375
        %392 = vmatpush.msra.mxu0 %v374
        %393 = vmatpush.msra.mxu0 %v373
        %394 = vmatpush.msra.mxu0 %v372
        %395 = vmatmul.f32.gmra.mxu0 %v377
        %v396 = vpop.f32.mrf.mxu0
        %v397 = vadd.f32 0.0, %v396
        %398 = vdwg.mxu0
        %v399 = vld [vmem:[#allocation10] sm:$0xff]
        %401 = vrot.lane.b32.xlu0 %v397, 96
        %v402 = vpop.permute.xlu0 %401
        %vm403 = vcmask 64512
        %v404 = vsel %vm403, %v397, 0
        %v406 = vsel %vm403, %v402, 0
        %408 = vmatpush.xpose.msra.mxu0 0.0
        %409 = vmatpush.xpose.msra.mxu0 0.0
        %410 = vmatpush.xpose.msra.mxu0 0.0
        %411 = vmatpush.xpose.msra.mxu0 0.0
        %412 = vmatpush.xpose.msra.mxu0 0.0
        %413 = vmatpush.xpose.msra.mxu0 0.0
        %414 = vmatpush.xpose.msra.mxu0 0.0
        %415 = vmatpush.xpose.msra.mxu0 0.0
        %416 = vmatpush.xpose.msra.mxu0 0.0
        %417 = vmatpush.xpose.msra.mxu0 0.0
        %418 = vmatpush.xpose.msra.mxu0 0.0
        %419 = vmatpush.xpose.msra.mxu0 0.0
        %420 = vmatpush.xpose.msra.mxu0 0.0
        %421 = vmatpush.xpose.msra.mxu0 0.0
        %422 = vmatpush.xpose.msra.mxu0 0.0
        %423 = vmatpush.xpose.msra.mxu0 %v406
        %424 = vmatmul.f32.gmra.mxu0 %v404
        %v425 = vpop.f32.mrf.mxu0
        %v426 = vadd.f32 %v399, %v425
        %427 = vdwg.mxu0
        %v428 = vsel %vm403, %v426, -inf
        %429 = vmax.xlane.f32.xlu0 %v428
        %v430 = vpop.xlane.xlu0 %429
        %v431 = vsub.f32 %v426, %v430
        %v432 = vmul.f32 %v431, 1.442695
        %v433 = vpow.pop %v432
        %v434 = vsel %vm403, %v433, 0.0
        %435 = vadd.xlane.f32.xlu0 %v434
        %v436 = vpop.xlane.xlu0 %435
        %v437 = vrcp.pop %v436
        %v438 = vmul.f32 %v433, %v437
        %439 = vrot.lane.b32.xlu0 %v397, 64
        %v440 = vpop.permute.xlu0 %439
        %v443 = vsel %vm403, %v438, 0
        %445 = vmatpush.msra.mxu0 0.0
        %446 = vmatpush.msra.mxu0 0.0
        %447 = vmatpush.msra.mxu0 0.0
        %448 = vmatpush.msra.mxu0 0.0
        %449 = vmatpush.msra.mxu0 0.0
        %450 = vmatpush.msra.mxu0 0.0
        %451 = vmatpush.msra.mxu0 0.0
        %452 = vmatpush.msra.mxu0 0.0
        %453 = vmatpush.msra.mxu0 0.0
        %454 = vmatpush.msra.mxu0 0.0
        %455 = vmatpush.msra.mxu0 0.0
        %456 = vmatpush.msra.mxu0 0.0
        %457 = vmatpush.msra.mxu0 0.0
        %458 = vmatpush.msra.mxu0 0.0
        %459 = vmatpush.msra.mxu0 0.0
        %460 = vmatpush.msra.mxu0 %v440
        %461 = vmatmul.f32.gmra.mxu0 %v443
        %v462 = vpop.f32.mrf.mxu0
        %v463 = vadd.f32 0.0, %v462
        %464 = vdwg.mxu0
        %v465 = vld [vmem:[#allocation8] sm:$0xff]
        %466 = vrot.lane.b32.xlu0 %v397, 120
        %v467 = vpop.permute.xlu0 %466
        %468 = vrot.lane.b32.xlu0 %v397, 88
        %v469 = vpop.permute.xlu0 %468
        %v470 = vsel %vm403, %v467, 0
        %v472 = vsel %vm403, %v469, 0
        %474 = vmatpush.xpose.msra.mxu0 0.0
        %475 = vmatpush.xpose.msra.mxu0 0.0
        %476 = vmatpush.xpose.msra.mxu0 0.0
        %477 = vmatpush.xpose.msra.mxu0 0.0
        %478 = vmatpush.xpose.msra.mxu0 0.0
        %479 = vmatpush.xpose.msra.mxu0 0.0
        %480 = vmatpush.xpose.msra.mxu0 0.0
        %481 = vmatpush.xpose.msra.mxu0 0.0
        %482 = vmatpush.xpose.msra.mxu0 0.0
        %483 = vmatpush.xpose.msra.mxu0 0.0
        %484 = vmatpush.xpose.msra.mxu0 0.0
        %485 = vmatpush.xpose.msra.mxu0 0.0
        %486 = vmatpush.xpose.msra.mxu0 0.0
        %487 = vmatpush.xpose.msra.mxu0 0.0
        %488 = vmatpush.xpose.msra.mxu0 0.0
        %489 = vmatpush.xpose.msra.mxu0 %v472
        %490 = vmatmul.f32.gmra.mxu0 %v470
        %v491 = vpop.f32.mrf.mxu0
        %v492 = vadd.f32 %v399, %v491
        %493 = vdwg.mxu0
        %v494 = vsel %vm403, %v492, -inf
        %495 = vmax.xlane.f32.xlu0 %v494
        %v496 = vpop.xlane.xlu0 %495
        %v497 = vsub.f32 %v492, %v496
        %v498 = vmul.f32 %v497, 1.442695
        %v499 = vpow.pop %v498
        %v500 = vsel %vm403, %v499, 0.0
        %501 = vadd.xlane.f32.xlu0 %v500
        %v502 = vpop.xlane.xlu0 %501
        %v503 = vrcp.pop %v502
        %v504 = vmul.f32 %v499, %v503
        %505 = vrot.lane.b32.xlu0 %v397, 56
        %v506 = vpop.permute.xlu0 %505
        %v509 = vsel %vm403, %v504, 0
        %511 = vmatpush.msra.mxu0 0.0
        %512 = vmatpush.msra.mxu0 0.0
        %513 = vmatpush.msra.mxu0 0.0
        %514 = vmatpush.msra.mxu0 0.0
        %515 = vmatpush.msra.mxu0 0.0
        %516 = vmatpush.msra.mxu0 0.0
        %517 = vmatpush.msra.mxu0 0.0
        %518 = vmatpush.msra.mxu0 0.0
        %519 = vmatpush.msra.mxu0 0.0
        %520 = vmatpush.msra.mxu0 0.0
        %521 = vmatpush.msra.mxu0 0.0
        %522 = vmatpush.msra.mxu0 0.0
        %523 = vmatpush.msra.mxu0 0.0
        %524 = vmatpush.msra.mxu0 0.0
        %525 = vmatpush.msra.mxu0 0.0
        %526 = vmatpush.msra.mxu0 %v506
        %527 = vmatmul.f32.gmra.mxu0 %v509
        %v528 = vpop.f32.mrf.mxu0
        %v529 = vadd.f32 0.0, %v528
        %530 = vdwg.mxu0
        %s531 = scalar_lea.vmem [#allocation8], 8
        %v532 = vld [vmem:[%s531] sm:$0xff]
        %v534 = vsel %vm403, %v529, 0
        %536 = vmatpush.msra.mxu0 0.0
        %537 = vmatpush.msra.mxu0 0.0
        %538 = vmatpush.msra.mxu0 0.0
        %539 = vmatpush.msra.mxu0 0.0
        %540 = vmatpush.msra.mxu0 0.0
        %541 = vmatpush.msra.mxu0 0.0
        %542 = vmatpush.msra.mxu0 0.0
        %543 = vmatpush.msra.mxu0 0.0
        %544 = vmatpush.msra.mxu0 0.0
        %545 = vmatpush.msra.mxu0 0.0
        %546 = vmatpush.msra.mxu0 0.0
        %547 = vmatpush.msra.mxu0 0.0
        %548 = vmatpush.msra.mxu0 0.0
        %549 = vmatpush.msra.mxu0 0.0
        %550 = vmatpush.msra.mxu0 0.0
        %551 = vmatpush.msra.mxu0 %v532
        %552 = vmatmul.f32.gmra.mxu0 %v534
        %v553 = vpop.f32.mrf.mxu0
        %v554 = vadd.f32 0.0, %v553
        %555 = vdwg.mxu0
        %v557 = vsel %vm403, %v463, 0
        %559 = vmatpush.msra.mxu0 0.0
        %560 = vmatpush.msra.mxu0 0.0
        %561 = vmatpush.msra.mxu0 0.0
        %562 = vmatpush.msra.mxu0 0.0
        %563 = vmatpush.msra.mxu0 0.0
        %564 = vmatpush.msra.mxu0 0.0
        %565 = vmatpush.msra.mxu0 0.0
        %566 = vmatpush.msra.mxu0 0.0
        %567 = vmatpush.msra.mxu0 0.0
        %568 = vmatpush.msra.mxu0 0.0
        %569 = vmatpush.msra.mxu0 0.0
        %570 = vmatpush.msra.mxu0 0.0
        %571 = vmatpush.msra.mxu0 0.0
        %572 = vmatpush.msra.mxu0 0.0
        %573 = vmatpush.msra.mxu0 0.0
        %574 = vmatpush.msra.mxu0 %v465
        %575 = vmatmul.f32.gmra.mxu0 %v557
        %v576 = vpop.f32.mrf.mxu0
        %v577 = vadd.f32 %v554, %v576
        %578 = vdwg.mxu0
        %579 = vrot.lane.b32.xlu0 %v397, 112
        %v580 = vpop.permute.xlu0 %579
        %581 = vrot.lane.b32.xlu0 %v397, 80
        %v582 = vpop.permute.xlu0 %581
        %v583 = vsel %vm403, %v580, 0
        %v585 = vsel %vm403, %v582, 0
        %587 = vmatpush.xpose.msra.mxu0 0.0
        %588 = vmatpush.xpose.msra.mxu0 0.0
        %589 = vmatpush.xpose.msra.mxu0 0.0
        %590 = vmatpush.xpose.msra.mxu0 0.0
        %591 = vmatpush.xpose.msra.mxu0 0.0
        %592 = vmatpush.xpose.msra.mxu0 0.0
        %593 = vmatpush.xpose.msra.mxu0 0.0
        %594 = vmatpush.xpose.msra.mxu0 0.0
        %595 = vmatpush.xpose.msra.mxu0 0.0
        %596 = vmatpush.xpose.msra.mxu0 0.0
        %597 = vmatpush.xpose.msra.mxu0 0.0
        %598 = vmatpush.xpose.msra.mxu0 0.0
        %599 = vmatpush.xpose.msra.mxu0 0.0
        %600 = vmatpush.xpose.msra.mxu0 0.0
        %601 = vmatpush.xpose.msra.mxu0 0.0
        %602 = vmatpush.xpose.msra.mxu0 %v585
        %603 = vmatmul.f32.gmra.mxu0 %v583
        %v604 = vpop.f32.mrf.mxu0
        %v605 = vadd.f32 %v399, %v604
        %606 = vdwg.mxu0
        %v607 = vsel %vm403, %v605, -inf
        %608 = vmax.xlane.f32.xlu0 %v607
        %v609 = vpop.xlane.xlu0 %608
        %v610 = vsub.f32 %v605, %v609
        %v611 = vmul.f32 %v610, 1.442695
        %v612 = vpow.pop %v611
        %v613 = vsel %vm403, %v612, 0.0
        %614 = vadd.xlane.f32.xlu0 %v613
        %v615 = vpop.xlane.xlu0 %614
        %v616 = vrcp.pop %v615
        %v617 = vmul.f32 %v612, %v616
        %618 = vrot.lane.b32.xlu0 %v397, 48
        %v619 = vpop.permute.xlu0 %618
        %v622 = vsel %vm403, %v617, 0
        %624 = vmatpush.msra.mxu0 0.0
        %625 = vmatpush.msra.mxu0 0.0
        %626 = vmatpush.msra.mxu0 0.0
        %627 = vmatpush.msra.mxu0 0.0
        %628 = vmatpush.msra.mxu0 0.0
        %629 = vmatpush.msra.mxu0 0.0
        %630 = vmatpush.msra.mxu0 0.0
        %631 = vmatpush.msra.mxu0 0.0
        %632 = vmatpush.msra.mxu0 0.0
        %633 = vmatpush.msra.mxu0 0.0
        %634 = vmatpush.msra.mxu0 0.0
        %635 = vmatpush.msra.mxu0 0.0
        %636 = vmatpush.msra.mxu0 0.0
        %637 = vmatpush.msra.mxu0 0.0
        %638 = vmatpush.msra.mxu0 0.0
        %639 = vmatpush.msra.mxu0 %v619
        %640 = vmatmul.f32.gmra.mxu0 %v622
        %v641 = vpop.f32.mrf.mxu0
        %v642 = vadd.f32 0.0, %v641
        %643 = vdwg.mxu0
        %s644 = scalar_lea.vmem [#allocation8], 16
        %v645 = vld [vmem:[%s644] sm:$0xff]
        %v647 = vsel %vm403, %v642, 0
        %649 = vmatpush.msra.mxu0 0.0
        %650 = vmatpush.msra.mxu0 0.0
        %651 = vmatpush.msra.mxu0 0.0
        %652 = vmatpush.msra.mxu0 0.0
        %653 = vmatpush.msra.mxu0 0.0
        %654 = vmatpush.msra.mxu0 0.0
        %655 = vmatpush.msra.mxu0 0.0
        %656 = vmatpush.msra.mxu0 0.0
        %657 = vmatpush.msra.mxu0 0.0
        %658 = vmatpush.msra.mxu0 0.0
        %659 = vmatpush.msra.mxu0 0.0
        %660 = vmatpush.msra.mxu0 0.0
        %661 = vmatpush.msra.mxu0 0.0
        %662 = vmatpush.msra.mxu0 0.0
        %663 = vmatpush.msra.mxu0 0.0
        %664 = vmatpush.msra.mxu0 %v645
        %665 = vmatmul.f32.gmra.mxu0 %v647
        %v666 = vpop.f32.mrf.mxu0
        %v667 = vadd.f32 0.0, %v666
        %668 = vdwg.mxu0
        %v669 = vadd.f32 %v577, %v667
        %670 = vrot.lane.b32.xlu0 %v397, 104
        %v671 = vpop.permute.xlu0 %670
        %672 = vrot.lane.b32.xlu0 %v397, 72
        %v673 = vpop.permute.xlu0 %672
        %v674 = vsel %vm403, %v671, 0
        %v676 = vsel %vm403, %v673, 0
        %678 = vmatpush.xpose.msra.mxu0 0.0
        %679 = vmatpush.xpose.msra.mxu0 0.0
        %680 = vmatpush.xpose.msra.mxu0 0.0
        %681 = vmatpush.xpose.msra.mxu0 0.0
        %682 = vmatpush.xpose.msra.mxu0 0.0
        %683 = vmatpush.xpose.msra.mxu0 0.0
        %684 = vmatpush.xpose.msra.mxu0 0.0
        %685 = vmatpush.xpose.msra.mxu0 0.0
        %686 = vmatpush.xpose.msra.mxu0 0.0
        %687 = vmatpush.xpose.msra.mxu0 0.0
        %688 = vmatpush.xpose.msra.mxu0 0.0
        %689 = vmatpush.xpose.msra.mxu0 0.0
        %690 = vmatpush.xpose.msra.mxu0 0.0
        %691 = vmatpush.xpose.msra.mxu0 0.0
        %692 = vmatpush.xpose.msra.mxu0 0.0
        %693 = vmatpush.xpose.msra.mxu0 %v676
        %694 = vmatmul.f32.gmra.mxu0 %v674
        %v695 = vpop.f32.mrf.mxu0
        %v696 = vadd.f32 %v399, %v695
        %697 = vdwg.mxu0
        %v698 = vsel %vm403, %v696, -inf
        %699 = vmax.xlane.f32.xlu0 %v698
        %v700 = vpop.xlane.xlu0 %699
        %v701 = vsub.f32 %v696, %v700
        %v702 = vmul.f32 %v701, 1.442695
        %v703 = vpow.pop %v702
        %v704 = vsel %vm403, %v703, 0.0
        %705 = vadd.xlane.f32.xlu0 %v704
        %v706 = vpop.xlane.xlu0 %705
        %v707 = vrcp.pop %v706
        %v708 = vmul.f32 %v703, %v707
        %709 = vrot.lane.b32.xlu0 %v397, 40
        %v710 = vpop.permute.xlu0 %709
        %v713 = vsel %vm403, %v708, 0
        %715 = vmatpush.msra.mxu0 0.0
        %716 = vmatpush.msra.mxu0 0.0
        %717 = vmatpush.msra.mxu0 0.0
        %718 = vmatpush.msra.mxu0 0.0
        %719 = vmatpush.msra.mxu0 0.0
        %720 = vmatpush.msra.mxu0 0.0
        %721 = vmatpush.msra.mxu0 0.0
        %722 = vmatpush.msra.mxu0 0.0
        %723 = vmatpush.msra.mxu0 0.0
        %724 = vmatpush.msra.mxu0 0.0
        %725 = vmatpush.msra.mxu0 0.0
        %726 = vmatpush.msra.mxu0 0.0
        %727 = vmatpush.msra.mxu0 0.0
        %728 = vmatpush.msra.mxu0 0.0
        %729 = vmatpush.msra.mxu0 0.0
        %730 = vmatpush.msra.mxu0 %v710
        %731 = vmatmul.f32.gmra.mxu0 %v713
        %v732 = vpop.f32.mrf.mxu0
        %v733 = vadd.f32 0.0, %v732
        %734 = vdwg.mxu0
        %s735 = scalar_lea.vmem [#allocation8], 24
        %v736 = vld [vmem:[%s735] sm:$0xff]
        %v738 = vsel %vm403, %v733, 0
        %740 = vmatpush.msra.mxu0 0.0
        %741 = vmatpush.msra.mxu0 0.0
        %742 = vmatpush.msra.mxu0 0.0
        %743 = vmatpush.msra.mxu0 0.0
        %744 = vmatpush.msra.mxu0 0.0
        %745 = vmatpush.msra.mxu0 0.0
        %746 = vmatpush.msra.mxu0 0.0
        %747 = vmatpush.msra.mxu0 0.0
        %748 = vmatpush.msra.mxu0 0.0
        %749 = vmatpush.msra.mxu0 0.0
        %750 = vmatpush.msra.mxu0 0.0
        %751 = vmatpush.msra.mxu0 0.0
        %752 = vmatpush.msra.mxu0 0.0
        %753 = vmatpush.msra.mxu0 0.0
        %754 = vmatpush.msra.mxu0 0.0
        %755 = vmatpush.msra.mxu0 %v736
        %756 = vmatmul.f32.gmra.mxu0 %v738
        %v757 = vpop.f32.mrf.mxu0
        %v758 = vadd.f32 0.0, %v757
        %759 = vdwg.mxu0
        %v760 = vadd.f32 %v669, %v758
        %761 = vst.msk [vmem:[%s330] sm:$0xff] %vm332, %v760
        %s762 = sand.u32 %s164, 1
        %s763 = scalar_lea.sflag [#allocation4], %s762
        %s764 = sand.u32 %s164, 1
        %s765 = smul.addr %s764, 8
        %s766 = scalar_lea.vmem [#allocation11], %s765
        // Predicated region
        $region65: #{tpu_custom_call.1} parent=43 // pred_check
          %p767 = pneg %p174
        $region66: #{tpu_custom_call.1} parent=43 // pred_check_branch
          %769 = sbr.rel (%p767) target = $region68
        $region67: #{tpu_custom_call.1} parent=43 // pred_region
          %771 = vsyncadd %s763, 0
          %s772 = smul.addr %s25, 8
          %s773 = scalar_lea.hbm %s6, %s772
          %s775 = sshll.u32 %s766, 4
          %s776 = int_to_ptr.vmem [resolvable:$true] %s775
          %s777 = sshll.u32 %s773, 4
          %s778 = int_to_ptr.hbm [resolvable:$true] %s777
          %780 = dma.vmem_to_hbm [thread:$0]  %s776, 128, %s778, %s763
        $region68: #{tpu_custom_call.1} parent=43 // pred_fallthru
          _
      $region44: #{tpu_custom_call.1} parent=5 // pred_fallthru
        _
      %p781 = scmp.le.s32.totalorder 2, %s20
      // Predicated region
      $region69: #{tpu_custom_call.1} parent=5 // pred_check
        %p782 = pneg %p781
      $region70: #{tpu_custom_call.1} parent=5 // pred_check_branch
        %784 = sbr.rel (%p782) target = $region72
      $region71: #{tpu_custom_call.1} parent=5 // pred_region
        %s785 = ssub.s32 %s20, 2
        // Predicated region
        $region73: #{tpu_custom_call.1} parent=71 // pred_check
          %p786 = pneg %p180
        $region74: #{tpu_custom_call.1} parent=71 // pred_check_branch
          %788 = sbr.rel (%p786) target = $region76
        $region75: #{tpu_custom_call.1} parent=71 // pred_region
          %s789 = sand.u32 %s165, 1
          %s790 = scalar_lea.sflag [#allocation4], %s789
          %s791 = sand.u32 %s165, 1
          %s792 = smul.addr %s791, 8
          %s793 = scalar_lea.vmem [#allocation11], %s792
          %795 = dma.done %s790, 128
        $region76: #{tpu_custom_call.1} parent=71 // pred_fallthru
          _
      $region72: #{tpu_custom_call.1} parent=5 // pred_fallthru
        _
    $region6: #{tpu_custom_call.1} parent=1 // loop_footer
      %s24 = sadd.s32 1, %s20
    $region7: #{tpu_custom_call.1} parent=1 // loop_footer_branch
      %19 = sbr.rel target = $region3
    $region8: #{tpu_custom_call.1} parent=1 // loop_exit
      _
    %796 = vsyncpa [#allocation3], 1
    %s797 = scalar_lea.sflag [#allocation3], 1
    %798 = vsyncpa %s797, 1
    %799 = vsyncpa [#allocation6], 1
    %800 = vsyncpa [#allocation9], 1
    %801 = vsyncpa [#allocation4], 1
    %s802 = scalar_lea.sflag [#allocation4], 1
    %803 = vsyncpa %s802, 1

</llo_original>
